<compile_context>
chip_gen: v7x
topology: tpu7x:2x2x1
jax: 0.10.0
libtpu: 0.0.40
codegen_flags: <defaults>
</compile_context>

<pallas_src>
import functools

import jax
import jax.numpy as jnp
from jax.experimental import pallas as pl
from jax.experimental.pallas import tpu as pltpu


# ----------------------------- fused Pallas kernel -----------------------------

def _make_fused_mlp_kernel(num_layers):
    """Kernel computing log_softmax(relu-chain MLP) for one batch tile.

    Ref order: (x_ref, w1_ref, b1_ref, ..., wL_ref, bL_ref, o_ref).
    Activations/weights are bf16 (MXU operands); accumulation, bias, relu and
    log-softmax are fp32. Hidden activations stay on-chip (never hit HBM).
    """

    def kernel(x_ref, *args):
        o_ref = args[-1]
        h = x_ref[...]                                      # bf16 (tb, Din0)
        for layer in range(num_layers):
            w_ref = args[2 * layer]
            b_ref = args[2 * layer + 1]
            acc = jnp.dot(h, w_ref[...],
                          preferred_element_type=jnp.float32)
            acc = acc + b_ref[...]                          # bias once, fp32
            if layer < num_layers - 1:
                # hidden layer: relu (+ identity dropout in eval mode),
                # cast back to bf16 so the next matmul feeds the MXU in bf16.
                h = jnp.maximum(acc, 0.0).astype(jnp.bfloat16)
            else:
                # final layer: log_softmax over features, all in fp32.
                m = jnp.max(acc, axis=1, keepdims=True)
                shifted = acc - m
                lse = jnp.log(jnp.sum(jnp.exp(shifted), axis=1, keepdims=True))
                o_ref[...] = (shifted - lse).astype(o_ref.dtype)

    return kernel


def _round_up(x, m):
    return ((x + m - 1) // m) * m


# ----------------------------- model wrapper -----------------------------

def init_classifier_params(key, in_features, hidden_layers, out_features):
    """Deterministic init matching the PyTorch layer shapes.
    Layer i (1-based): Linear(round(in/2^(i-1)), round(in/2^i)) for i < hidden_layers,
    final layer: Linear(round(in/2^(hidden_layers-1)), out_features).
    Uses the nn.Linear default uniform(-1/sqrt(fan_in), 1/sqrt(fan_in))."""
    params = []
    dims = []
    idx = 1
    while idx < hidden_layers:
        d_in = round(in_features / 2 ** (idx - 1))
        d_out = round(in_features / 2 ** idx)
        dims.append((d_in, d_out))
        idx += 1
    dims.append((round(in_features / 2 ** (idx - 1)), out_features))

    for (d_in, d_out) in dims:
        key, kw, kb = jax.random.split(key, 3)
        bound = 1.0 / (d_in ** 0.5)
        # store weight as (d_in, d_out) so the kernel computes x @ w directly
        w = jax.random.uniform(kw, (d_in, d_out), jnp.float32, -bound, bound)
        b = jax.random.uniform(kb, (1, d_out), jnp.float32, -bound, bound)
        params.append((w, b))
    return tuple(params)


@functools.partial(jax.jit, static_argnames=("batch_tile",))
def classifier_forward(x, params, batch_tile=128):
    # flatten: (B, C, H, W) -> (B, C*H*W)   [plain-JAX glue, same as x.view(B,-1)]
    B = x.shape[0]
    feats = x.reshape(B, -1).astype(jnp.float32)
    din0 = feats.shape[1]
    num_layers = len(params)
    out_features = params[-1][0].shape[1]

    # Batch padding / tiling: pad to a multiple of 8 (sublane) for small B,
    # or to a multiple of `batch_tile` and tile the grid over batch for big B.
    if B <= batch_tile:
        b_pad = _round_up(max(B, 8), 8)
        tb = b_pad
    else:
        b_pad = _round_up(B, batch_tile)
        tb = batch_tile
    if b_pad != B:
        feats = jnp.pad(feats, ((0, b_pad - B), (0, 0)))
    feats = feats.astype(jnp.bfloat16)                      # bf16 MXU operand

    # Build inputs + BlockSpecs: x blocked on batch; weights/biases full-extent
    # with a constant index_map so they stay resident in VMEM across the grid.
    inputs = [feats]
    in_specs = [pl.BlockSpec((tb, din0), lambda i: (i, 0))]
    flops = 0
    bytes_accessed = feats.size * 2 + b_pad * out_features * 4
    for (w, b) in params:
        d_in, d_out = w.shape
        inputs.append(w.astype(jnp.bfloat16))               # bf16 MXU operand
        inputs.append(b.astype(jnp.float32))                # fp32 bias
        in_specs.append(pl.BlockSpec((d_in, d_out), lambda i: (0, 0)))
        in_specs.append(pl.BlockSpec((1, d_out), lambda i: (0, 0)))
        flops += 2 * b_pad * d_in * d_out
        bytes_accessed += d_in * d_out * 2 + d_out * 4

    out = pl.pallas_call(
        _make_fused_mlp_kernel(num_layers),
        out_shape=jax.ShapeDtypeStruct((b_pad, out_features), jnp.float32),
        grid=(b_pad // tb,),
        in_specs=in_specs,
        out_specs=pl.BlockSpec((tb, out_features), lambda i: (i, 0)),
        compiler_params=pltpu.CompilerParams(
            dimension_semantics=("parallel",)),
        cost_estimate=pl.CostEstimate(
            flops=flops,
            transcendentals=b_pad * (out_features + 1),
            bytes_accessed=bytes_accessed),
    )(*inputs)
    return out[:B]


# Pure-JAX reference (same bf16 operand / fp32 accumulation recipe) for checking.
def classifier_reference(x, params):
    B = x.shape[0]
    h = x.reshape(B, -1).astype(jnp.bfloat16)
    for (w, b) in params[:-1]:
        z = jnp.dot(h, w.astype(jnp.bfloat16),
                    preferred_element_type=jnp.float32) + b
        h = jnp.maximum(z, 0.0).astype(jnp.bfloat16)
    w, b = params[-1]
    z = jnp.dot(h, w.astype(jnp.bfloat16),
                preferred_element_type=jnp.float32) + b
    return jax.nn.log_softmax(z, axis=1)


# ----------------------------- demo / check -----------------------------

if __name__ == "__main__":
    key = jax.random.PRNGKey(0)

    # Small shapes consistent with the module: NCHW input (2, 4, 8, 8) -> 256 features.
    B, C, H, W = 2, 4, 8, 8
    in_features = C * H * W          # 256
    hidden_layers = 3                # fc1: 256->128, fc2: 128->64, fc3: 64->10
    out_features = 10

    kx, kp = jax.random.split(key)
    x = jax.random.normal(kx, (B, C, H, W), jnp.float32)
    params = init_classifier_params(kp, in_features, hidden_layers, out_features)

    out = classifier_forward(x, params)
    out = jax.block_until_ready(out)

    assert out.shape == (B, out_features)

    # sanity 1: log_softmax rows should sum (in prob space) to ~1
    row_sums = jnp.sum(jnp.exp(out), axis=1)
    assert bool(jnp.all(jnp.abs(row_sums - 1.0) < 1e-4))

    # sanity 2: match the pure-JAX reference (same bf16/fp32 recipe)
    ref = classifier_reference(x, params)
    assert bool(jnp.max(jnp.abs(out - ref)) < 5e-2)

    print("KERNEL_OK")
</pallas_src>

<mosaic_0001>
module attributes {stable_mosaic.version = 11 : i64} {
  func.func @kernel(%arg0: i32, %arg1: memref<8x256xbf16, #tpu.memory_space<vmem>>, %arg2: memref<256x128xbf16, #tpu.memory_space<vmem>>, %arg3: memref<1x128xf32, #tpu.memory_space<vmem>>, %arg4: memref<128x64xbf16, #tpu.memory_space<vmem>>, %arg5: memref<1x64xf32, #tpu.memory_space<vmem>>, %arg6: memref<64x10xbf16, #tpu.memory_space<vmem>>, %arg7: memref<1x10xf32, #tpu.memory_space<vmem>>, %arg8: memref<8x10xf32, #tpu.memory_space<vmem>>) attributes {dimension_semantics = [#tpu.dimension_semantics<parallel>], iteration_bounds = array<i64: 1>, scalar_prefetch = 0 : i64, scratch_operands = 0 : i64, tpu.core_type = #tpu.core_type<tc>, window_params = [{transform_indices = @transform_0, window_bounds = array<i64: 8, 256>}, {pipeline_mode = #tpu.pipeline_mode<synchronous>, transform_indices = @transform_1, window_bounds = array<i64: 256, 128>}, {pipeline_mode = #tpu.pipeline_mode<synchronous>, transform_indices = @transform_2, window_bounds = array<i64: 1, 128>}, {pipeline_mode = #tpu.pipeline_mode<synchronous>, transform_indices = @transform_3, window_bounds = array<i64: 128, 64>}, {pipeline_mode = #tpu.pipeline_mode<synchronous>, transform_indices = @transform_4, window_bounds = array<i64: 1, 64>}, {pipeline_mode = #tpu.pipeline_mode<synchronous>, transform_indices = @transform_5, window_bounds = array<i64: 64, 10>}, {pipeline_mode = #tpu.pipeline_mode<synchronous>, transform_indices = @transform_6, window_bounds = array<i64: 1, 10>}, {transform_indices = @transform_7, window_bounds = array<i64: 8, 10>}]} {
    %c0 = arith.constant 0 : index
    %c0_0 = arith.constant 0 : index
    %0 = vector.load %arg1[%c0, %c0_0] : memref<8x256xbf16, #tpu.memory_space<vmem>>, vector<8x256xbf16>
    %c0_1 = arith.constant 0 : index
    %c0_2 = arith.constant 0 : index
    %1 = vector.load %arg2[%c0_1, %c0_2] : memref<256x128xbf16, #tpu.memory_space<vmem>>, vector<256x128xbf16>
    %cst = arith.constant dense<0.000000e+00> : vector<8x128xf32>
    %2 = tpu.matmul %0, %1, %cst {dimension_numbers = #tpu.dot_dimension_numbers<[1], [0], [0], [1], [0, 0, 1, 1], [], []>} : vector<8x256xbf16>, vector<256x128xbf16>, vector<8x128xf32> -> vector<8x128xf32>
    %c0_3 = arith.constant 0 : index
    %c0_4 = arith.constant 0 : index
    %3 = vector.load %arg3[%c0_3, %c0_4] : memref<1x128xf32, #tpu.memory_space<vmem>>, vector<1x128xf32>
    %4 = vector.broadcast %3 : vector<1x128xf32> to vector<8x128xf32>
    %5 = arith.addf %2, %4 : vector<8x128xf32>
    %cst_5 = arith.constant 0.000000e+00 : f32
    %6 = vector.broadcast %cst_5 : f32 to vector<8x128xf32>
    %7 = arith.maximumf %5, %6 : vector<8x128xf32>
    %8 = arith.truncf %7 : vector<8x128xf32> to vector<8x128xbf16>
    %c0_6 = arith.constant 0 : index
    %c0_7 = arith.constant 0 : index
    %9 = vector.load %arg4[%c0_6, %c0_7] : memref<128x64xbf16, #tpu.memory_space<vmem>>, vector<128x64xbf16>
    %cst_8 = arith.constant dense<0.000000e+00> : vector<8x64xf32>
    %10 = tpu.matmul %8, %9, %cst_8 {dimension_numbers = #tpu.dot_dimension_numbers<[1], [0], [0], [1], [0, 0, 1, 1], [], []>} : vector<8x128xbf16>, vector<128x64xbf16>, vector<8x64xf32> -> vector<8x64xf32>
    %c0_9 = arith.constant 0 : index
    %c0_10 = arith.constant 0 : index
    %11 = vector.load %arg5[%c0_9, %c0_10] : memref<1x64xf32, #tpu.memory_space<vmem>>, vector<1x64xf32>
    %12 = vector.broadcast %11 : vector<1x64xf32> to vector<8x64xf32>
    %13 = arith.addf %10, %12 : vector<8x64xf32>
    %cst_11 = arith.constant 0.000000e+00 : f32
    %14 = vector.broadcast %cst_11 : f32 to vector<8x64xf32>
    %15 = arith.maximumf %13, %14 : vector<8x64xf32>
    %16 = arith.truncf %15 : vector<8x64xf32> to vector<8x64xbf16>
    %c0_12 = arith.constant 0 : index
    %c0_13 = arith.constant 0 : index
    %17 = vector.load %arg6[%c0_12, %c0_13] : memref<64x10xbf16, #tpu.memory_space<vmem>>, vector<64x10xbf16>
    %cst_14 = arith.constant dense<0.000000e+00> : vector<8x10xf32>
    %18 = tpu.matmul %16, %17, %cst_14 {dimension_numbers = #tpu.dot_dimension_numbers<[1], [0], [0], [1], [0, 0, 1, 1], [], []>} : vector<8x64xbf16>, vector<64x10xbf16>, vector<8x10xf32> -> vector<8x10xf32>
    %c0_15 = arith.constant 0 : index
    %c0_16 = arith.constant 0 : index
    %19 = vector.load %arg7[%c0_15, %c0_16] : memref<1x10xf32, #tpu.memory_space<vmem>>, vector<1x10xf32>
    %20 = vector.broadcast %19 : vector<1x10xf32> to vector<8x10xf32>
    %21 = arith.addf %18, %20 : vector<8x10xf32>
    %cst_17 = arith.constant dense<0xFF800000> : vector<8xf32>
    %22 = vector.multi_reduction <maximumf>, %21, %cst_17 [1] : vector<8x10xf32> to vector<8xf32>
    %23 = vector.shape_cast %22 : vector<8xf32> to vector<8x1xf32>
    %24 = vector.broadcast %23 : vector<8x1xf32> to vector<8x10xf32>
    %25 = arith.subf %21, %24 : vector<8x10xf32>
    %26 = math.exp %25 : vector<8x10xf32>
    %cst_18 = arith.constant dense<0.000000e+00> : vector<8xf32>
    %27 = vector.multi_reduction <add>, %26, %cst_18 [1] : vector<8x10xf32> to vector<8xf32>
    %28 = vector.shape_cast %27 : vector<8xf32> to vector<8x1xf32>
    %29 = math.log %28 : vector<8x1xf32>
    %30 = vector.broadcast %29 : vector<8x1xf32> to vector<8x10xf32>
    %31 = arith.subf %25, %30 : vector<8x10xf32>
    %c0_19 = arith.constant 0 : index
    %c0_20 = arith.constant 0 : index
    %32 = vector.load %arg8[%c0_19, %c0_20] : memref<8x10xf32, #tpu.memory_space<vmem>>, vector<8x10xf32>
    tpu.vector_store %arg8[%c0_19, %c0_20], %31 {strides = array<i32>} : memref<8x10xf32, #tpu.memory_space<vmem>>, vector<8x10xf32>,
    return
  }
  func.func @transform_0(%arg0: i32) -> (i32, i32) {
    %c0_i32 = arith.constant 0 : i32
    %c0_i32_0 = arith.constant 0 : i32
    return %arg0, %c0_i32 : i32, i32
  }
  func.func @transform_1(%arg0: i32) -> (i32, i32) {
    %c0_i32 = arith.constant 0 : i32
    %c0_i32_0 = arith.constant 0 : i32
    %c0_i32_1 = arith.constant 0 : i32
    return %c0_i32, %c0_i32_0 : i32, i32
  }
  func.func @transform_2(%arg0: i32) -> (i32, i32) {
    %c0_i32 = arith.constant 0 : i32
    %c0_i32_0 = arith.constant 0 : i32
    %c0_i32_1 = arith.constant 0 : i32
    return %c0_i32, %c0_i32_0 : i32, i32
  }
  func.func @transform_3(%arg0: i32) -> (i32, i32) {
    %c0_i32 = arith.constant 0 : i32
    %c0_i32_0 = arith.constant 0 : i32
    %c0_i32_1 = arith.constant 0 : i32
    return %c0_i32, %c0_i32_0 : i32, i32
  }
  func.func @transform_4(%arg0: i32) -> (i32, i32) {
    %c0_i32 = arith.constant 0 : i32
    %c0_i32_0 = arith.constant 0 : i32
    %c0_i32_1 = arith.constant 0 : i32
    return %c0_i32, %c0_i32_0 : i32, i32
  }
  func.func @transform_5(%arg0: i32) -> (i32, i32) {
    %c0_i32 = arith.constant 0 : i32
    %c0_i32_0 = arith.constant 0 : i32
    %c0_i32_1 = arith.constant 0 : i32
    return %c0_i32, %c0_i32_0 : i32, i32
  }
  func.func @transform_6(%arg0: i32) -> (i32, i32) {
    %c0_i32 = arith.constant 0 : i32
    %c0_i32_0 = arith.constant 0 : i32
    %c0_i32_1 = arith.constant 0 : i32
    return %c0_i32, %c0_i32_0 : i32, i32
  }
  func.func @transform_7(%arg0: i32) -> (i32, i32) {
    %c0_i32 = arith.constant 0 : i32
    %c0_i32_0 = arith.constant 0 : i32
    return %arg0, %c0_i32 : i32, i32
  }
}

</mosaic_0001>

<llo_original>
// kernel: classifier_forward.1
$region0: #{classifier_forward.1}
  #allocation0 [shape = 'u32[]', space=smem, size = 0x4, offset = 0x4, fixed_abs, tag = 'smem constant byte address 0x4 - core index']
  #allocation1 [shape = 'u32[144,128]{1,0:T(1,128)}', space=vmem, size = 0x12000, scoped, tag = 'internal scratch']
  %s0 = inlined_call_operand.vmem [shape: bf16[8,256], index: 0, kind: input, shape index: {}]
  %s1 = inlined_call_operand.vmem [shape: bf16[256,128], index: 1, kind: input, shape index: {}]
  %s2 = inlined_call_operand.vmem [shape: f32[1,128], index: 2, kind: input, shape index: {}]
  %s3 = inlined_call_operand.vmem [shape: bf16[128,64], index: 3, kind: input, shape index: {}]
  %s4 = inlined_call_operand.vmem [shape: f32[1,64], index: 4, kind: input, shape index: {}]
  %s5 = inlined_call_operand.vmem [shape: bf16[64,10], index: 5, kind: input, shape index: {}]
  %s6 = inlined_call_operand.vmem [shape: f32[1,10], index: 6, kind: input, shape index: {}]
  %s7 = inlined_call_operand.vmem [shape: f32[8,10], index: 7, kind: output, shape index: {}]
  %s8 = sld [smem:[#allocation0]]
  $region38: #{classifier_forward.1} parent=0
    _
  %s10 = ssub.s32 1, %s8
  %s11 = scalar_select 0, %s10, %s8
  // Predicated region
  $region2: #{classifier_forward.1} parent=0 // pred_check
    _
  $region3: #{classifier_forward.1} parent=0 // pred_check_branch
    %13 = sbr.rel (0) target = $region5
  $region4: #{classifier_forward.1} parent=0 // pred_region
    _
  $region5: #{classifier_forward.1} parent=0 // pred_fallthru
    _
  // Predicated region
  $region6: #{classifier_forward.1} parent=0 // pred_check
    _
  $region7: #{classifier_forward.1} parent=0 // pred_check_branch
    %15 = sbr.rel (0) target = $region9
  $region8: #{classifier_forward.1} parent=0 // pred_region
    _
  $region9: #{classifier_forward.1} parent=0 // pred_fallthru
    _
  // Predicated region
  $region10: #{classifier_forward.1} parent=0 // pred_check
    _
  $region11: #{classifier_forward.1} parent=0 // pred_check_branch
    %17 = sbr.rel (0) target = $region13
  $region12: #{classifier_forward.1} parent=0 // pred_region
    _
  $region13: #{classifier_forward.1} parent=0 // pred_fallthru
    _
  // Predicated region
  $region14: #{classifier_forward.1} parent=0 // pred_check
    _
  $region15: #{classifier_forward.1} parent=0 // pred_check_branch
    %19 = sbr.rel (0) target = $region17
  $region16: #{classifier_forward.1} parent=0 // pred_region
    _
  $region17: #{classifier_forward.1} parent=0 // pred_fallthru
    _
  // Predicated region
  $region18: #{classifier_forward.1} parent=0 // pred_check
    _
  $region19: #{classifier_forward.1} parent=0 // pred_check_branch
    %21 = sbr.rel (0) target = $region21
  $region20: #{classifier_forward.1} parent=0 // pred_region
    _
  $region21: #{classifier_forward.1} parent=0 // pred_fallthru
    _
  // Predicated region
  $region22: #{classifier_forward.1} parent=0 // pred_check
    _
  $region23: #{classifier_forward.1} parent=0 // pred_check_branch
    %23 = sbr.rel (0) target = $region25
  $region24: #{classifier_forward.1} parent=0 // pred_region
    _
  $region25: #{classifier_forward.1} parent=0 // pred_fallthru
    _
  // Predicated region
  $region26: #{classifier_forward.1} parent=0 // pred_check
    _
  $region27: #{classifier_forward.1} parent=0 // pred_check_branch
    %25 = sbr.rel (0) target = $region29
  $region28: #{classifier_forward.1} parent=0 // pred_region
    _
  $region29: #{classifier_forward.1} parent=0 // pred_fallthru
    _
  %v27 = vld [vmem:[%s0] sm:$0xff]
  %v28 = vld [vmem:[%s1] sm:$0xf]
  %v29 = vld [vmem:[%s1 + $0x4] sm:$0xf]
  %v30 = vld [vmem:[%s1 + $0x8] sm:$0xf]
  %v31 = vld [vmem:[%s1 + $0xc] sm:$0xf]
  %v32 = vld [vmem:[%s1 + $0x10] sm:$0xf]
  %v33 = vld [vmem:[%s1 + $0x14] sm:$0xf]
  %v34 = vld [vmem:[%s1 + $0x18] sm:$0xf]
  %v35 = vld [vmem:[%s1 + $0x1c] sm:$0xf]
  %v36 = vld [vmem:[%s1 + $0x20] sm:$0xf]
  %v37 = vld [vmem:[%s1 + $0x24] sm:$0xf]
  %v38 = vld [vmem:[%s1 + $0x28] sm:$0xf]
  %v39 = vld [vmem:[%s1 + $0x2c] sm:$0xf]
  %v40 = vld [vmem:[%s1 + $0x30] sm:$0xf]
  %v41 = vld [vmem:[%s1 + $0x34] sm:$0xf]
  %v42 = vld [vmem:[%s1 + $0x38] sm:$0xf]
  %v43 = vld [vmem:[%s1 + $0x3c] sm:$0xf]
  %v44 = vld [vmem:[%s1 + $0x40] sm:$0xf]
  %v45 = vld [vmem:[%s1 + $0x44] sm:$0xf]
  %v46 = vld [vmem:[%s1 + $0x48] sm:$0xf]
  %v47 = vld [vmem:[%s1 + $0x4c] sm:$0xf]
  %v48 = vld [vmem:[%s1 + $0x50] sm:$0xf]
  %v49 = vld [vmem:[%s1 + $0x54] sm:$0xf]
  %v50 = vld [vmem:[%s1 + $0x58] sm:$0xf]
  %v51 = vld [vmem:[%s1 + $0x5c] sm:$0xf]
  %v52 = vld [vmem:[%s1 + $0x60] sm:$0xf]
  %v53 = vld [vmem:[%s1 + $0x64] sm:$0xf]
  %v54 = vld [vmem:[%s1 + $0x68] sm:$0xf]
  %v55 = vld [vmem:[%s1 + $0x6c] sm:$0xf]
  %v56 = vld [vmem:[%s1 + $0x70] sm:$0xf]
  %v57 = vld [vmem:[%s1 + $0x74] sm:$0xf]
  %v58 = vld [vmem:[%s1 + $0x78] sm:$0xf]
  %v59 = vld [vmem:[%s1 + $0x7c] sm:$0xf]
  %v60 = vld [vmem:[%s2] sm:$0x1]
  %v62 = vlaneseq
  %v63 = vshrl.u32 %v62, 7
  %v64 = vsub.s32 0, %v63
  %v65 = vrot.slane %v60, %v64
  %v68 = vunpack.c.l.b16 %v27
  %v69 = vunpack.c.h.b16 %v27
  %v70 = vpack.c.b16 %v68, %v68
  %v71 = vpack.c.b16 %v69, %v69
  %v106 = vunpack.c.l.b16 %v28
  %v107 = vunpack.c.l.b16 %v29
  %v108 = vunpack.c.l.b16 %v30
  %v109 = vunpack.c.l.b16 %v31
  %v110 = vunpack.c.l.b16 %v32
  %v111 = vunpack.c.l.b16 %v33
  %v112 = vunpack.c.l.b16 %v34
  %v113 = vunpack.c.l.b16 %v35
  %v114 = vunpack.c.l.b16 %v36
  %v115 = vunpack.c.l.b16 %v37
  %v116 = vunpack.c.l.b16 %v38
  %v117 = vunpack.c.l.b16 %v39
  %v118 = vunpack.c.l.b16 %v40
  %v119 = vunpack.c.l.b16 %v41
  %v120 = vunpack.c.l.b16 %v42
  %v121 = vunpack.c.l.b16 %v43
  %v122 = vunpack.c.l.b16 %v44
  %v123 = vunpack.c.l.b16 %v45
  %v124 = vunpack.c.l.b16 %v46
  %v125 = vunpack.c.l.b16 %v47
  %v126 = vunpack.c.l.b16 %v48
  %v127 = vunpack.c.l.b16 %v49
  %v128 = vunpack.c.l.b16 %v50
  %v129 = vunpack.c.l.b16 %v51
  %v130 = vunpack.c.l.b16 %v52
  %v131 = vunpack.c.l.b16 %v53
  %v132 = vunpack.c.l.b16 %v54
  %v133 = vunpack.c.l.b16 %v55
  %v134 = vunpack.c.l.b16 %v56
  %v135 = vunpack.c.l.b16 %v57
  %v136 = vunpack.c.l.b16 %v58
  %v137 = vunpack.c.l.b16 %v59
  %v138 = vpack.c.b16 %v107, %v106
  %v139 = vpack.c.b16 %v109, %v108
  %v140 = vpack.c.b16 %v111, %v110
  %v141 = vpack.c.b16 %v113, %v112
  %v142 = vpack.c.b16 %v115, %v114
  %v143 = vpack.c.b16 %v117, %v116
  %v144 = vpack.c.b16 %v119, %v118
  %v145 = vpack.c.b16 %v121, %v120
  %v146 = vpack.c.b16 %v123, %v122
  %v147 = vpack.c.b16 %v125, %v124
  %v148 = vpack.c.b16 %v127, %v126
  %v149 = vpack.c.b16 %v129, %v128
  %v150 = vpack.c.b16 %v131, %v130
  %v151 = vpack.c.b16 %v133, %v132
  %v152 = vpack.c.b16 %v135, %v134
  %v153 = vpack.c.b16 %v137, %v136
  %170 = vmatprep.subr.bf16.mxu0 0
  %171 = vmatpush1.bf16.msra.mxu0 %v138
  %172 = vmatprep.subr.bf16.mxu0 0
  %173 = vmatpush1.bf16.msra.mxu0 %v139
  %174 = vmatprep.subr.bf16.mxu0 0
  %175 = vmatpush1.bf16.msra.mxu0 %v140
  %176 = vmatprep.subr.bf16.mxu0 0
  %177 = vmatpush1.bf16.msra.mxu0 %v141
  %178 = vmatprep.subr.bf16.mxu0 0
  %179 = vmatpush1.bf16.msra.mxu0 %v142
  %180 = vmatprep.subr.bf16.mxu0 0
  %181 = vmatpush1.bf16.msra.mxu0 %v143
  %182 = vmatprep.subr.bf16.mxu0 0
  %183 = vmatpush1.bf16.msra.mxu0 %v144
  %184 = vmatprep.subr.bf16.mxu0 0
  %185 = vmatpush1.bf16.msra.mxu0 %v145
  %186 = vmatprep.subr.bf16.mxu0 0
  %187 = vmatpush1.bf16.msra.mxu0 %v146
  %188 = vmatprep.subr.bf16.mxu0 0
  %189 = vmatpush1.bf16.msra.mxu0 %v147
  %190 = vmatprep.subr.bf16.mxu0 0
  %191 = vmatpush1.bf16.msra.mxu0 %v148
  %192 = vmatprep.subr.bf16.mxu0 0
  %193 = vmatpush1.bf16.msra.mxu0 %v149
  %194 = vmatprep.subr.bf16.mxu0 0
  %195 = vmatpush1.bf16.msra.mxu0 %v150
  %196 = vmatprep.subr.bf16.mxu0 0
  %197 = vmatpush1.bf16.msra.mxu0 %v151
  %198 = vmatprep.subr.bf16.mxu0 0
  %199 = vmatpush1.bf16.msra.mxu0 %v152
  %200 = vmatprep.subr.bf16.mxu0 0
  %201 = vmatpush1.bf16.msra.mxu0 %v153
  %202 = vmatprep.mubr.bf16.mxu0 %v71
  %203 = vmatmul.mubr.bf16.gmra.mrb[0].mxu0 %v70
  %v204 = vpop.f32.mrb[0].mxu0
  %v205 = vadd.f32 %v65, %v204
  %v206 = vpop.f32.mrb[0].mxu0
  %v207 = vpop.f32.mrb[0].mxu0
  %v208 = vpop.f32.mrb[0].mxu0
  %209 = vdwg.mxu0
  %v210 = vmax.f32 %v205, 0.0
  %v211 = vpack.c.bf16 %v210, %v210
  %v212 = vld [vmem:[%s3] sm:$0xf]
  %v213 = vld [vmem:[%s3 + $0x4] sm:$0xf]
  %v214 = vld [vmem:[%s3 + $0x8] sm:$0xf]
  %v215 = vld [vmem:[%s3 + $0xc] sm:$0xf]
  %v216 = vld [vmem:[%s3 + $0x10] sm:$0xf]
  %v217 = vld [vmem:[%s3 + $0x14] sm:$0xf]
  %v218 = vld [vmem:[%s3 + $0x18] sm:$0xf]
  %v219 = vld [vmem:[%s3 + $0x1c] sm:$0xf]
  %v220 = vld [vmem:[%s3 + $0x20] sm:$0xf]
  %v221 = vld [vmem:[%s3 + $0x24] sm:$0xf]
  %v222 = vld [vmem:[%s3 + $0x28] sm:$0xf]
  %v223 = vld [vmem:[%s3 + $0x2c] sm:$0xf]
  %v224 = vld [vmem:[%s3 + $0x30] sm:$0xf]
  %v225 = vld [vmem:[%s3 + $0x34] sm:$0xf]
  %v226 = vld [vmem:[%s3 + $0x38] sm:$0xf]
  %v227 = vld [vmem:[%s3 + $0x3c] sm:$0xf]
  %v228 = vld [vmem:[%s4] sm:$0x1]
  %v230 = vlaneseq
  %v231 = vshrl.u32 %v230, 7
  %v232 = vsub.s32 0, %v231
  %v233 = vrot.slane %v228, %v232
  %v251 = vunpack.c.l.b16 %v212
  %v252 = vunpack.c.l.b16 %v213
  %v253 = vunpack.c.l.b16 %v214
  %v254 = vunpack.c.l.b16 %v215
  %v255 = vunpack.c.l.b16 %v216
  %v256 = vunpack.c.l.b16 %v217
  %v257 = vunpack.c.l.b16 %v218
  %v258 = vunpack.c.l.b16 %v219
  %v259 = vunpack.c.l.b16 %v220
  %v260 = vunpack.c.l.b16 %v221
  %v261 = vunpack.c.l.b16 %v222
  %v262 = vunpack.c.l.b16 %v223
  %v263 = vunpack.c.l.b16 %v224
  %v264 = vunpack.c.l.b16 %v225
  %v265 = vunpack.c.l.b16 %v226
  %v266 = vunpack.c.l.b16 %v227
  %v267 = vpack.c.b16 %v252, %v251
  %v268 = vpack.c.b16 %v254, %v253
  %v269 = vpack.c.b16 %v256, %v255
  %v270 = vpack.c.b16 %v258, %v257
  %v271 = vpack.c.b16 %v260, %v259
  %v272 = vpack.c.b16 %v262, %v261
  %v273 = vpack.c.b16 %v264, %v263
  %v274 = vpack.c.b16 %v266, %v265
  %283 = vmatprep.subr.bf16.mxu0 0
  %284 = vmatpush1.bf16.msra.mxu0 %v267
  %285 = vmatprep.subr.bf16.mxu0 0
  %286 = vmatpush1.bf16.msra.mxu0 %v268
  %287 = vmatprep.subr.bf16.mxu0 0
  %288 = vmatpush1.bf16.msra.mxu0 %v269
  %289 = vmatprep.subr.bf16.mxu0 0
  %290 = vmatpush1.bf16.msra.mxu0 %v270
  %291 = vmatprep.subr.bf16.mxu0 0
  %292 = vmatpush1.bf16.msra.mxu0 %v271
  %293 = vmatprep.subr.bf16.mxu0 0
  %294 = vmatpush1.bf16.msra.mxu0 %v272
  %295 = vmatprep.subr.bf16.mxu0 0
  %296 = vmatpush1.bf16.msra.mxu0 %v273
  %297 = vmatprep.subr.bf16.mxu0 0
  %298 = vmatpush1.bf16.msra.mxu0 %v274
  %299 = vmatprep.subr.bf16.mxu0 0
  %300 = vmatpush1.bf16.msra.mxu0 0
  %301 = vmatprep.subr.bf16.mxu0 0
  %302 = vmatpush1.bf16.msra.mxu0 0
  %303 = vmatprep.subr.bf16.mxu0 0
  %304 = vmatpush1.bf16.msra.mxu0 0
  %305 = vmatprep.subr.bf16.mxu0 0
  %306 = vmatpush1.bf16.msra.mxu0 0
  %307 = vmatprep.subr.bf16.mxu0 0
  %308 = vmatpush1.bf16.msra.mxu0 0
  %309 = vmatprep.subr.bf16.mxu0 0
  %310 = vmatpush1.bf16.msra.mxu0 0
  %311 = vmatprep.subr.bf16.mxu0 0
  %312 = vmatpush1.bf16.msra.mxu0 0
  %313 = vmatprep.subr.bf16.mxu0 0
  %314 = vmatpush1.bf16.msra.mxu0 0
  %315 = vmatprep.mubr.bf16.mxu0 0
  %316 = vmatmul.mubr.bf16.gmra.mrb[0].mxu0 %v211
  %v317 = vpop.f32.mrb[0].mxu0
  %v318 = vadd.f32 %v233, %v317
  %v319 = vpop.f32.mrb[0].mxu0
  %v320 = vpop.f32.mrb[0].mxu0
  %v321 = vpop.f32.mrb[0].mxu0
  %322 = vdwg.mxu0
  %v323 = vmax.f32 %v318, 0.0
  %v324 = vpack.c.bf16 %v323, %v323
  %v325 = vld [vmem:[%s5] sm:$0xf]
  %v326 = vld [vmem:[%s5 + $0x4] sm:$0xf]
  %v327 = vld [vmem:[%s5 + $0x8] sm:$0xf]
  %v328 = vld [vmem:[%s5 + $0xc] sm:$0xf]
  %v329 = vld [vmem:[%s5 + $0x10] sm:$0xf]
  %v330 = vld [vmem:[%s5 + $0x14] sm:$0xf]
  %v331 = vld [vmem:[%s5 + $0x18] sm:$0xf]
  %v332 = vld [vmem:[%s5 + $0x1c] sm:$0xf]
  %v333 = vld [vmem:[%s6] sm:$0x1]
  %v335 = vlaneseq
  %v336 = vshrl.u32 %v335, 7
  %v337 = vsub.s32 0, %v336
  %v338 = vrot.slane %v333, %v337
  %v348 = vunpack.c.l.b16 %v325
  %v349 = vunpack.c.l.b16 %v326
  %v350 = vunpack.c.l.b16 %v327
  %v351 = vunpack.c.l.b16 %v328
  %v352 = vunpack.c.l.b16 %v329
  %v353 = vunpack.c.l.b16 %v330
  %v354 = vunpack.c.l.b16 %v331
  %v355 = vunpack.c.l.b16 %v332
  %v356 = vpack.c.b16 %v349, %v348
  %v357 = vpack.c.b16 %v351, %v350
  %v358 = vpack.c.b16 %v353, %v352
  %v359 = vpack.c.b16 %v355, %v354
  %vm364 = vcmask 523264
  %v366 = vsel %vm364, %v324, 0
  %368 = vmatprep.subr.bf16.mxu0 0
  %369 = vmatpush1.bf16.msra.mxu0 %v356
  %370 = vmatprep.subr.bf16.mxu0 0
  %371 = vmatpush1.bf16.msra.mxu0 %v357
  %372 = vmatprep.subr.bf16.mxu0 0
  %373 = vmatpush1.bf16.msra.mxu0 %v358
  %374 = vmatprep.subr.bf16.mxu0 0
  %375 = vmatpush1.bf16.msra.mxu0 %v359
  %376 = vmatprep.subr.bf16.mxu0 0
  %377 = vmatpush1.bf16.msra.mxu0 0
  %378 = vmatprep.subr.bf16.mxu0 0
  %379 = vmatpush1.bf16.msra.mxu0 0
  %380 = vmatprep.subr.bf16.mxu0 0
  %381 = vmatpush1.bf16.msra.mxu0 0
  %382 = vmatprep.subr.bf16.mxu0 0
  %383 = vmatpush1.bf16.msra.mxu0 0
  %384 = vmatprep.subr.bf16.mxu0 0
  %385 = vmatpush1.bf16.msra.mxu0 0
  %386 = vmatprep.subr.bf16.mxu0 0
  %387 = vmatpush1.bf16.msra.mxu0 0
  %388 = vmatprep.subr.bf16.mxu0 0
  %389 = vmatpush1.bf16.msra.mxu0 0
  %390 = vmatprep.subr.bf16.mxu0 0
  %391 = vmatpush1.bf16.msra.mxu0 0
  %392 = vmatprep.subr.bf16.mxu0 0
  %393 = vmatpush1.bf16.msra.mxu0 0
  %394 = vmatprep.subr.bf16.mxu0 0
  %395 = vmatpush1.bf16.msra.mxu0 0
  %396 = vmatprep.subr.bf16.mxu0 0
  %397 = vmatpush1.bf16.msra.mxu0 0
  %398 = vmatprep.subr.bf16.mxu0 0
  %399 = vmatpush1.bf16.msra.mxu0 0
  %400 = vmatprep.mubr.bf16.mxu0 0
  %401 = vmatmul.mubr.bf16.gmra.mrb[0].mxu0 %v366
  %v402 = vpop.f32.mrb[0].mxu0
  %v403 = vadd.f32 %v338, %v402
  %v404 = vpop.f32.mrb[0].mxu0
  %v405 = vpop.f32.mrb[0].mxu0
  %v406 = vpop.f32.mrb[0].mxu0
  %407 = vdwg.mxu0
  %vm408 = vcmask 80896
  %v409 = vsel %vm408, %v403, -inf
  %410 = vmax.xlane.f32.xlu0 %v409
  %v411 = vpop.xlane.xlu0 %410
  %v412 = vsub.f32 %v403, %v411
  %v413 = vmul.f32 %v412, 1.442695
  %v414 = vpow.pop %v413
  %v415 = vsel %vm408, %v414, 0.0
  %416 = vadd.xlane.f32.xlu0 %v415
  %v417 = vpop.xlane.xlu0 %416
  %v418 = vlog2.pop %v417
  %v419 = vmul.f32 %v418, 0.6931472
  %v420 = vsub.f32 %v412, %v419
  %421 = vst.msk [vmem:[%s7] sm:$0xff] %vm408, %v420
  // Predicated region
  $region30: #{classifier_forward.1} parent=0 // pred_check
    _
  $region31: #{classifier_forward.1} parent=0 // pred_check_branch
    %423 = sbr.rel (0) target = $region33
  $region32: #{classifier_forward.1} parent=0 // pred_region
    _
  $region33: #{classifier_forward.1} parent=0 // pred_fallthru
    _
  // Predicated region
  $region34: #{classifier_forward.1} parent=0 // pred_check
    _
  $region35: #{classifier_forward.1} parent=0 // pred_check_branch
    %425 = sbr.rel (0) target = $region37
  $region36: #{classifier_forward.1} parent=0 // pred_region
    _
  $region37: #{classifier_forward.1} parent=0 // pred_fallthru
    _

</llo_original>
